<compile_context>
chip_gen: v7x
topology: tpu7x:2x2x1
jax: 0.10.0
libtpu: 0.0.40
codegen_flags: <defaults>
</compile_context>

<pallas_src>
from functools import partial

import jax
import jax.numpy as jnp
from jax.experimental import pallas as pl
from jax.experimental.pallas import tpu as pltpu


def residual_block_kernel(w_ref, b_ref, x_ref, o_ref, hl_ref, *,
                          kernel_size, dilations_list, compute_dtype):
    """One batch element per grid step.

    w_ref : (n_convs, K*C, C)  stacked per-tap conv weights (compute dtype)
    b_ref : (n_convs, C, 1)    conv biases (f32)
    x_ref : (1, C, L)          input slab for this batch element
    o_ref : (1, C, L)          output slab
    hl_ref: (C, L) f32 VMEM    running residual activation (scratch)
    """
    K = kernel_size
    C, L = hl_ref.shape

    # Lane-index plane, hoisted once (masks the causal left edge after rolls).
    col = jax.lax.broadcasted_iota(jnp.int32, (C, L), 1)

    hl_ref[...] = x_ref[0].astype(jnp.float32)

    conv_idx = 0
    for dilations in dilations_list:               # one ResidualLayer each
        h = hl_ref[...]                            # layer input, f32
        for d in dilations:
            # LeakyReLU(0.2) on the VPU, then cast the matmul operand.
            h = jnp.where(h > 0, h, 0.2 * h)
            hc = h.astype(compute_dtype)

            # One stacked matmul for all K taps: (K*C, C) @ (C, L) -> (K*C, L)
            z = jnp.dot(w_ref[conv_idx], hc,
                        preferred_element_type=jnp.float32)

            # Tap k = K-1 has zero causal shift: seed the accumulator with it
            # plus the bias (no zeros slab, no extra add).
            y = z[(K - 1) * C:, :] + b_ref[conv_idx]

            # Remaining taps: shift right by (K-1-k)*d along L with an XLU
            # lane-roll and zero the wrapped-around left edge via the iota
            # mask (replaces the old zero-pad + concatenate full-slab copies).
            for k in range(K - 1):
                s = (K - 1 - k) * d                # static, > 0
                if s >= L:
                    # entire tap falls left of the causal window -> contributes 0
                    continue
                stripe = pltpu.roll(z[k * C:(k + 1) * C, :], s, axis=1)
                y = y + jnp.where(col >= s, stripe, 0.0)

            h = y
            conv_idx += 1

        hl_ref[...] = hl_ref[...] + h              # residual skip

    o_ref[0] = hl_ref[...].astype(o_ref.dtype)


def residual_block(x, weights, biases, *, kernel_size, dilations_list,
                   compute_dtype=jnp.bfloat16):
    """x: (B, C, L); weights: (n_convs, K, C, C); biases: (n_convs, C[, 1])."""
    B, C, L = x.shape
    n_convs, K, C_out, C_in = weights.shape
    assert K == kernel_size and C_out == C and C_in == C
    assert L % 128 == 0, "keep L lane-dense (multiple of 128) for unmasked stores"

    # Stack the K per-tap matrices into one (K*C, C) operand per conv and cast
    # the matmul weights to the compute dtype once, outside the kernel.
    w_stacked = weights.reshape(n_convs, K * C, C).astype(compute_dtype)
    b = biases.reshape(n_convs, C, 1).astype(jnp.float32)

    kernel = partial(residual_block_kernel, kernel_size=K,
                     dilations_list=dilations_list,
                     compute_dtype=compute_dtype)

    # NOTE: weight/bias index maps are grid-invariant so their blocks are only
    # fetched once; at production channel counts consider single-buffering
    # them (pipeline_mode=pl.Buffered(1)) to reclaim the second VMEM buffer.
    # TODO(synk): for production RAVE lengths (L ~ 10k-64k) add an L-tile grid
    # axis with a causal halo carried in VMEM scratch so the working set fits
    # v7x's 64 MiB VMEM; unnecessary at this full-slab-per-batch size.
    return pl.pallas_call(
        kernel,
        out_shape=jax.ShapeDtypeStruct((B, C, L), x.dtype),
        grid=(B,),
        in_specs=[
            pl.BlockSpec((n_convs, K * C, C), lambda bi: (0, 0, 0)),
            pl.BlockSpec((n_convs, C, 1), lambda bi: (0, 0, 0)),
            pl.BlockSpec((1, C, L), lambda bi: (bi, 0, 0)),
        ],
        out_specs=pl.BlockSpec((1, C, L), lambda bi: (bi, 0, 0)),
        scratch_shapes=[pltpu.VMEM((C, L), jnp.float32)],
        compiler_params=pltpu.CompilerParams(
            dimension_semantics=("parallel",),
            vmem_limit_bytes=64 * 1024 * 1024,
        ),
    )(w_stacked, b, x)


def residual_block_ref(x, weights, biases, *, kernel_size, dilations_list):
    """Pure-JAX reference (lax.conv_general_dilated), mirrors the PyTorch fwd."""
    K = kernel_size
    conv_idx = 0
    h_layer = x
    for dilations in dilations_list:
        h = h_layer
        for d in dilations:
            h = jnp.where(h > 0, h, 0.2 * h)
            pad = (K - 1) * d
            # weights[conv_idx]: (K, C_out, C_in) -> torch OIH layout (C_out, C_in, K)
            w = jnp.transpose(weights[conv_idx], (1, 2, 0))
            h = jax.lax.conv_general_dilated(
                h, w, window_strides=(1,), padding=[(pad, 0)],
                rhs_dilation=(d,),
                dimension_numbers=("NCH", "OIH", "NCH"))
            h = h + biases[conv_idx][None]
            conv_idx += 1
        h_layer = h_layer + h
    return h_layer


if __name__ == "__main__":
    # Small, module-consistent configuration (L chosen lane-dense).
    dim = 16
    length = 256
    batch = 2
    kernel_size = 3
    dilations_list = ((1, 3), (5, 7))        # two ResidualLayers
    n_convs = sum(len(ds) for ds in dilations_list)

    key = jax.random.PRNGKey(0)
    kx, kw, kb = jax.random.split(key, 3)

    x = jax.random.normal(kx, (batch, dim, length), dtype=jnp.float32)
    # Deterministic synthetic conv parameters (shapes from nn.Conv1d(dim, dim, K)).
    weights = 0.1 * jax.random.normal(
        kw, (n_convs, kernel_size, dim, dim), dtype=jnp.float32)
    biases = 0.05 * jax.random.normal(kb, (n_convs, dim, 1), dtype=jnp.float32)

    ref = jax.block_until_ready(residual_block_ref(
        x, weights, biases, kernel_size=kernel_size,
        dilations_list=dilations_list))

    # f32 MXU path: strict check against the lax.conv reference.
    out_f32 = jax.block_until_ready(residual_block(
        x, weights, biases, kernel_size=kernel_size,
        dilations_list=dilations_list, compute_dtype=jnp.float32))
    assert out_f32.shape == x.shape
    assert jnp.allclose(out_f32, ref, atol=1e-4, rtol=1e-4), "f32 mismatch vs reference"

    # bf16 MXU path (production default): f32 accumulation, loose tolerance.
    out_bf16 = jax.block_until_ready(residual_block(
        x, weights, biases, kernel_size=kernel_size,
        dilations_list=dilations_list, compute_dtype=jnp.bfloat16))
    assert out_bf16.shape == x.shape
    assert float(jnp.max(jnp.abs(out_bf16 - ref))) < 1e-1, "bf16 mismatch vs reference"

    print("KERNEL_OK")
</pallas_src>

<mosaic_0001>
module attributes {stable_mosaic.version = 11 : i64} {
  func.func @residual_block_kernel(%arg0: i32, %arg1: memref<4x48x16xf32, #tpu.memory_space<vmem>>, %arg2: memref<4x16x1xf32, #tpu.memory_space<vmem>>, %arg3: memref<1x16x256xf32, #tpu.memory_space<vmem>>, %arg4: memref<1x16x256xf32, #tpu.memory_space<vmem>>, %arg5: memref<16x256xf32, #tpu.memory_space<vmem>>) attributes {dimension_semantics = [#tpu.dimension_semantics<parallel>], iteration_bounds = array<i64: 2>, scalar_prefetch = 0 : i64, scratch_operands = 1 : i64, tpu.core_type = #tpu.core_type<tc>, window_params = [{pipeline_mode = #tpu.pipeline_mode<synchronous>, transform_indices = @transform_0, window_bounds = array<i64: 4, 48, 16>}, {pipeline_mode = #tpu.pipeline_mode<synchronous>, transform_indices = @transform_1, window_bounds = array<i64: 4, 16, 1>}, {transform_indices = @transform_2, window_bounds = array<i64: 1, 16, 256>}, {transform_indices = @transform_3, window_bounds = array<i64: 1, 16, 256>}]} {
    %0 = tpu.iota {dimensions = array<i32: 1>} : vector<16x256xi32>
    %c0 = arith.constant 0 : index
    %c0_0 = arith.constant 0 : index
    %c0_1 = arith.constant 0 : index
    %1 = vector.load %arg3[%c0, %c0_0, %c0_1] : memref<1x16x256xf32, #tpu.memory_space<vmem>>, vector<1x16x256xf32>
    %2 = vector.shape_cast %1 : vector<1x16x256xf32> to vector<16x256xf32>
    %c0_2 = arith.constant 0 : index
    %c0_3 = arith.constant 0 : index
    %3 = vector.load %arg5[%c0_2, %c0_3] : memref<16x256xf32, #tpu.memory_space<vmem>>, vector<16x256xf32>
    tpu.vector_store %arg5[%c0_2, %c0_3], %2 {strides = array<i32>} : memref<16x256xf32, #tpu.memory_space<vmem>>, vector<16x256xf32>,
    %c0_4 = arith.constant 0 : index
    %c0_5 = arith.constant 0 : index
    %4 = vector.load %arg5[%c0_4, %c0_5] : memref<16x256xf32, #tpu.memory_space<vmem>>, vector<16x256xf32>
    %cst = arith.constant 0.000000e+00 : f32
    %5 = vector.broadcast %cst : f32 to vector<16x256xf32>
    %6 = arith.cmpf ogt, %4, %5 : vector<16x256xf32>
    %cst_6 = arith.constant 2.000000e-01 : f32
    %7 = vector.broadcast %cst_6 : f32 to vector<16x256xf32>
    %8 = arith.mulf %7, %4 : vector<16x256xf32>
    %9 = arith.select %6, %4, %8 : vector<16x256xi1>, vector<16x256xf32>
    %c0_7 = arith.constant 0 : index
    %c0_8 = arith.constant 0 : index
    %c0_9 = arith.constant 0 : index
    %10 = vector.load %arg1[%c0_7, %c0_8, %c0_9] : memref<4x48x16xf32, #tpu.memory_space<vmem>>, vector<1x48x16xf32>
    %11 = vector.shape_cast %10 : vector<1x48x16xf32> to vector<48x16xf32>
    %cst_10 = arith.constant dense<0.000000e+00> : vector<48x256xf32>
    %12 = tpu.matmul %11, %9, %cst_10 {dimension_numbers = #tpu.dot_dimension_numbers<[1], [0], [0], [1], [0, 0, 1, 1], [], []>} : vector<48x16xf32>, vector<16x256xf32>, vector<48x256xf32> -> vector<48x256xf32>
    %13 = vector.extract_strided_slice %12 {offsets = [32, 0], sizes = [16, 256], strides = [1, 1]} : vector<48x256xf32> to vector<16x256xf32>
    %c0_11 = arith.constant 0 : index
    %c0_12 = arith.constant 0 : index
    %c0_13 = arith.constant 0 : index
    %14 = vector.load %arg2[%c0_11, %c0_12, %c0_13] : memref<4x16x1xf32, #tpu.memory_space<vmem>>, vector<1x16x1xf32>
    %15 = vector.shape_cast %14 : vector<1x16x1xf32> to vector<16x1xf32>
    %16 = vector.broadcast %15 : vector<16x1xf32> to vector<16x256xf32>
    %17 = arith.addf %13, %16 : vector<16x256xf32>
    %18 = vector.extract_strided_slice %12 {offsets = [0, 0], sizes = [16, 256], strides = [1, 1]} : vector<48x256xf32> to vector<16x256xf32>
    %c2_i32 = arith.constant 2 : i32
    %19 = tpu.dynamic_rotate %18 by %c2_i32 dim 1 : vector<16x256xf32>, i32 -> vector<16x256xf32>
    %c2_i32_14 = arith.constant 2 : i32
    %20 = vector.broadcast %c2_i32_14 : i32 to vector<16x256xi32>
    %21 = arith.cmpi sge, %0, %20 : vector<16x256xi32>
    %cst_15 = arith.constant 0.000000e+00 : f32
    %22 = vector.broadcast %cst_15 : f32 to vector<16x256xf32>
    %23 = arith.select %21, %19, %22 : vector<16x256xi1>, vector<16x256xf32>
    %24 = arith.addf %17, %23 : vector<16x256xf32>
    %25 = vector.extract_strided_slice %12 {offsets = [16, 0], sizes = [16, 256], strides = [1, 1]} : vector<48x256xf32> to vector<16x256xf32>
    %c1_i32 = arith.constant 1 : i32
    %26 = tpu.dynamic_rotate %25 by %c1_i32 dim 1 : vector<16x256xf32>, i32 -> vector<16x256xf32>
    %c1_i32_16 = arith.constant 1 : i32
    %27 = vector.broadcast %c1_i32_16 : i32 to vector<16x256xi32>
    %28 = arith.cmpi sge, %0, %27 : vector<16x256xi32>
    %cst_17 = arith.constant 0.000000e+00 : f32
    %29 = vector.broadcast %cst_17 : f32 to vector<16x256xf32>
    %30 = arith.select %28, %26, %29 : vector<16x256xi1>, vector<16x256xf32>
    %31 = arith.addf %24, %30 : vector<16x256xf32>
    %cst_18 = arith.constant 0.000000e+00 : f32
    %32 = vector.broadcast %cst_18 : f32 to vector<16x256xf32>
    %33 = arith.cmpf ogt, %31, %32 : vector<16x256xf32>
    %cst_19 = arith.constant 2.000000e-01 : f32
    %34 = vector.broadcast %cst_19 : f32 to vector<16x256xf32>
    %35 = arith.mulf %34, %31 : vector<16x256xf32>
    %36 = arith.select %33, %31, %35 : vector<16x256xi1>, vector<16x256xf32>
    %c1 = arith.constant 1 : index
    %c0_20 = arith.constant 0 : index
    %c0_21 = arith.constant 0 : index
    %37 = vector.load %arg1[%c1, %c0_20, %c0_21] : memref<4x48x16xf32, #tpu.memory_space<vmem>>, vector<1x48x16xf32>
    %38 = vector.shape_cast %37 : vector<1x48x16xf32> to vector<48x16xf32>
    %cst_22 = arith.constant dense<0.000000e+00> : vector<48x256xf32>
    %39 = tpu.matmul %38, %36, %cst_22 {dimension_numbers = #tpu.dot_dimension_numbers<[1], [0], [0], [1], [0, 0, 1, 1], [], []>} : vector<48x16xf32>, vector<16x256xf32>, vector<48x256xf32> -> vector<48x256xf32>
    %40 = vector.extract_strided_slice %39 {offsets = [32, 0], sizes = [16, 256], strides = [1, 1]} : vector<48x256xf32> to vector<16x256xf32>
    %c1_23 = arith.constant 1 : index
    %c0_24 = arith.constant 0 : index
    %c0_25 = arith.constant 0 : index
    %41 = vector.load %arg2[%c1_23, %c0_24, %c0_25] : memref<4x16x1xf32, #tpu.memory_space<vmem>>, vector<1x16x1xf32>
    %42 = vector.shape_cast %41 : vector<1x16x1xf32> to vector<16x1xf32>
    %43 = vector.broadcast %42 : vector<16x1xf32> to vector<16x256xf32>
    %44 = arith.addf %40, %43 : vector<16x256xf32>
    %45 = vector.extract_strided_slice %39 {offsets = [0, 0], sizes = [16, 256], strides = [1, 1]} : vector<48x256xf32> to vector<16x256xf32>
    %c6_i32 = arith.constant 6 : i32
    %46 = tpu.dynamic_rotate %45 by %c6_i32 dim 1 : vector<16x256xf32>, i32 -> vector<16x256xf32>
    %c6_i32_26 = arith.constant 6 : i32
    %47 = vector.broadcast %c6_i32_26 : i32 to vector<16x256xi32>
    %48 = arith.cmpi sge, %0, %47 : vector<16x256xi32>
    %cst_27 = arith.constant 0.000000e+00 : f32
    %49 = vector.broadcast %cst_27 : f32 to vector<16x256xf32>
    %50 = arith.select %48, %46, %49 : vector<16x256xi1>, vector<16x256xf32>
    %51 = arith.addf %44, %50 : vector<16x256xf32>
    %52 = vector.extract_strided_slice %39 {offsets = [16, 0], sizes = [16, 256], strides = [1, 1]} : vector<48x256xf32> to vector<16x256xf32>
    %c3_i32 = arith.constant 3 : i32
    %53 = tpu.dynamic_rotate %52 by %c3_i32 dim 1 : vector<16x256xf32>, i32 -> vector<16x256xf32>
    %c3_i32_28 = arith.constant 3 : i32
    %54 = vector.broadcast %c3_i32_28 : i32 to vector<16x256xi32>
    %55 = arith.cmpi sge, %0, %54 : vector<16x256xi32>
    %cst_29 = arith.constant 0.000000e+00 : f32
    %56 = vector.broadcast %cst_29 : f32 to vector<16x256xf32>
    %57 = arith.select %55, %53, %56 : vector<16x256xi1>, vector<16x256xf32>
    %58 = arith.addf %51, %57 : vector<16x256xf32>
    %c0_30 = arith.constant 0 : index
    %c0_31 = arith.constant 0 : index
    %59 = vector.load %arg5[%c0_30, %c0_31] : memref<16x256xf32, #tpu.memory_space<vmem>>, vector<16x256xf32>
    %60 = arith.addf %59, %58 : vector<16x256xf32>
    %c0_32 = arith.constant 0 : index
    %c0_33 = arith.constant 0 : index
    %61 = vector.load %arg5[%c0_32, %c0_33] : memref<16x256xf32, #tpu.memory_space<vmem>>, vector<16x256xf32>
    tpu.vector_store %arg5[%c0_32, %c0_33], %60 {strides = array<i32>} : memref<16x256xf32, #tpu.memory_space<vmem>>, vector<16x256xf32>,
    %c0_34 = arith.constant 0 : index
    %c0_35 = arith.constant 0 : index
    %62 = vector.load %arg5[%c0_34, %c0_35] : memref<16x256xf32, #tpu.memory_space<vmem>>, vector<16x256xf32>
    %cst_36 = arith.constant 0.000000e+00 : f32
    %63 = vector.broadcast %cst_36 : f32 to vector<16x256xf32>
    %64 = arith.cmpf ogt, %62, %63 : vector<16x256xf32>
    %cst_37 = arith.constant 2.000000e-01 : f32
    %65 = vector.broadcast %cst_37 : f32 to vector<16x256xf32>
    %66 = arith.mulf %65, %62 : vector<16x256xf32>
    %67 = arith.select %64, %62, %66 : vector<16x256xi1>, vector<16x256xf32>
    %c2 = arith.constant 2 : index
    %c0_38 = arith.constant 0 : index
    %c0_39 = arith.constant 0 : index
    %68 = vector.load %arg1[%c2, %c0_38, %c0_39] : memref<4x48x16xf32, #tpu.memory_space<vmem>>, vector<1x48x16xf32>
    %69 = vector.shape_cast %68 : vector<1x48x16xf32> to vector<48x16xf32>
    %cst_40 = arith.constant dense<0.000000e+00> : vector<48x256xf32>
    %70 = tpu.matmul %69, %67, %cst_40 {dimension_numbers = #tpu.dot_dimension_numbers<[1], [0], [0], [1], [0, 0, 1, 1], [], []>} : vector<48x16xf32>, vector<16x256xf32>, vector<48x256xf32> -> vector<48x256xf32>
    %71 = vector.extract_strided_slice %70 {offsets = [32, 0], sizes = [16, 256], strides = [1, 1]} : vector<48x256xf32> to vector<16x256xf32>
    %c2_41 = arith.constant 2 : index
    %c0_42 = arith.constant 0 : index
    %c0_43 = arith.constant 0 : index
    %72 = vector.load %arg2[%c2_41, %c0_42, %c0_43] : memref<4x16x1xf32, #tpu.memory_space<vmem>>, vector<1x16x1xf32>
    %73 = vector.shape_cast %72 : vector<1x16x1xf32> to vector<16x1xf32>
    %74 = vector.broadcast %73 : vector<16x1xf32> to vector<16x256xf32>
    %75 = arith.addf %71, %74 : vector<16x256xf32>
    %76 = vector.extract_strided_slice %70 {offsets = [0, 0], sizes = [16, 256], strides = [1, 1]} : vector<48x256xf32> to vector<16x256xf32>
    %c10_i32 = arith.constant 10 : i32
    %77 = tpu.dynamic_rotate %76 by %c10_i32 dim 1 : vector<16x256xf32>, i32 -> vector<16x256xf32>
    %c10_i32_44 = arith.constant 10 : i32
    %78 = vector.broadcast %c10_i32_44 : i32 to vector<16x256xi32>
    %79 = arith.cmpi sge, %0, %78 : vector<16x256xi32>
    %cst_45 = arith.constant 0.000000e+00 : f32
    %80 = vector.broadcast %cst_45 : f32 to vector<16x256xf32>
    %81 = arith.select %79, %77, %80 : vector<16x256xi1>, vector<16x256xf32>
    %82 = arith.addf %75, %81 : vector<16x256xf32>
    %83 = vector.extract_strided_slice %70 {offsets = [16, 0], sizes = [16, 256], strides = [1, 1]} : vector<48x256xf32> to vector<16x256xf32>
    %c5_i32 = arith.constant 5 : i32
    %84 = tpu.dynamic_rotate %83 by %c5_i32 dim 1 : vector<16x256xf32>, i32 -> vector<16x256xf32>
    %c5_i32_46 = arith.constant 5 : i32
    %85 = vector.broadcast %c5_i32_46 : i32 to vector<16x256xi32>
    %86 = arith.cmpi sge, %0, %85 : vector<16x256xi32>
    %cst_47 = arith.constant 0.000000e+00 : f32
    %87 = vector.broadcast %cst_47 : f32 to vector<16x256xf32>
    %88 = arith.select %86, %84, %87 : vector<16x256xi1>, vector<16x256xf32>
    %89 = arith.addf %82, %88 : vector<16x256xf32>
    %cst_48 = arith.constant 0.000000e+00 : f32
    %90 = vector.broadcast %cst_48 : f32 to vector<16x256xf32>
    %91 = arith.cmpf ogt, %89, %90 : vector<16x256xf32>
    %cst_49 = arith.constant 2.000000e-01 : f32
    %92 = vector.broadcast %cst_49 : f32 to vector<16x256xf32>
    %93 = arith.mulf %92, %89 : vector<16x256xf32>
    %94 = arith.select %91, %89, %93 : vector<16x256xi1>, vector<16x256xf32>
    %c3 = arith.constant 3 : index
    %c0_50 = arith.constant 0 : index
    %c0_51 = arith.constant 0 : index
    %95 = vector.load %arg1[%c3, %c0_50, %c0_51] : memref<4x48x16xf32, #tpu.memory_space<vmem>>, vector<1x48x16xf32>
    %96 = vector.shape_cast %95 : vector<1x48x16xf32> to vector<48x16xf32>
    %cst_52 = arith.constant dense<0.000000e+00> : vector<48x256xf32>
    %97 = tpu.matmul %96, %94, %cst_52 {dimension_numbers = #tpu.dot_dimension_numbers<[1], [0], [0], [1], [0, 0, 1, 1], [], []>} : vector<48x16xf32>, vector<16x256xf32>, vector<48x256xf32> -> vector<48x256xf32>
    %98 = vector.extract_strided_slice %97 {offsets = [32, 0], sizes = [16, 256], strides = [1, 1]} : vector<48x256xf32> to vector<16x256xf32>
    %c3_53 = arith.constant 3 : index
    %c0_54 = arith.constant 0 : index
    %c0_55 = arith.constant 0 : index
    %99 = vector.load %arg2[%c3_53, %c0_54, %c0_55] : memref<4x16x1xf32, #tpu.memory_space<vmem>>, vector<1x16x1xf32>
    %100 = vector.shape_cast %99 : vector<1x16x1xf32> to vector<16x1xf32>
    %101 = vector.broadcast %100 : vector<16x1xf32> to vector<16x256xf32>
    %102 = arith.addf %98, %101 : vector<16x256xf32>
    %103 = vector.extract_strided_slice %97 {offsets = [0, 0], sizes = [16, 256], strides = [1, 1]} : vector<48x256xf32> to vector<16x256xf32>
    %c14_i32 = arith.constant 14 : i32
    %104 = tpu.dynamic_rotate %103 by %c14_i32 dim 1 : vector<16x256xf32>, i32 -> vector<16x256xf32>
    %c14_i32_56 = arith.constant 14 : i32
    %105 = vector.broadcast %c14_i32_56 : i32 to vector<16x256xi32>
    %106 = arith.cmpi sge, %0, %105 : vector<16x256xi32>
    %cst_57 = arith.constant 0.000000e+00 : f32
    %107 = vector.broadcast %cst_57 : f32 to vector<16x256xf32>
    %108 = arith.select %106, %104, %107 : vector<16x256xi1>, vector<16x256xf32>
    %109 = arith.addf %102, %108 : vector<16x256xf32>
    %110 = vector.extract_strided_slice %97 {offsets = [16, 0], sizes = [16, 256], strides = [1, 1]} : vector<48x256xf32> to vector<16x256xf32>
    %c7_i32 = arith.constant 7 : i32
    %111 = tpu.dynamic_rotate %110 by %c7_i32 dim 1 : vector<16x256xf32>, i32 -> vector<16x256xf32>
    %c7_i32_58 = arith.constant 7 : i32
    %112 = vector.broadcast %c7_i32_58 : i32 to vector<16x256xi32>
    %113 = arith.cmpi sge, %0, %112 : vector<16x256xi32>
    %cst_59 = arith.constant 0.000000e+00 : f32
    %114 = vector.broadcast %cst_59 : f32 to vector<16x256xf32>
    %115 = arith.select %113, %111, %114 : vector<16x256xi1>, vector<16x256xf32>
    %116 = arith.addf %109, %115 : vector<16x256xf32>
    %c0_60 = arith.constant 0 : index
    %c0_61 = arith.constant 0 : index
    %117 = vector.load %arg5[%c0_60, %c0_61] : memref<16x256xf32, #tpu.memory_space<vmem>>, vector<16x256xf32>
    %118 = arith.addf %117, %116 : vector<16x256xf32>
    %c0_62 = arith.constant 0 : index
    %c0_63 = arith.constant 0 : index
    %119 = vector.load %arg5[%c0_62, %c0_63] : memref<16x256xf32, #tpu.memory_space<vmem>>, vector<16x256xf32>
    tpu.vector_store %arg5[%c0_62, %c0_63], %118 {strides = array<i32>} : memref<16x256xf32, #tpu.memory_space<vmem>>, vector<16x256xf32>,
    %c0_64 = arith.constant 0 : index
    %c0_65 = arith.constant 0 : index
    %120 = vector.load %arg5[%c0_64, %c0_65] : memref<16x256xf32, #tpu.memory_space<vmem>>, vector<16x256xf32>
    %c0_66 = arith.constant 0 : index
    %c0_67 = arith.constant 0 : index
    %c0_68 = arith.constant 0 : index
    %121 = vector.load %arg4[%c0_66, %c0_67, %c0_68] : memref<1x16x256xf32, #tpu.memory_space<vmem>>, vector<1x16x256xf32>
    %122 = vector.shape_cast %121 : vector<1x16x256xf32> to vector<16x256xf32>
    %123 = vector.shape_cast %120 : vector<16x256xf32> to vector<1x16x256xf32>
    tpu.vector_store %arg4[%c0_66, %c0_67, %c0_68], %123 {strides = array<i32>} : memref<1x16x256xf32, #tpu.memory_space<vmem>>, vector<1x16x256xf32>,
    return
  }
  func.func @transform_0(%arg0: i32) -> (i32, i32, i32) {
    %c0_i32 = arith.constant 0 : i32
    %c0_i32_0 = arith.constant 0 : i32
    %c0_i32_1 = arith.constant 0 : i32
    %c0_i32_2 = arith.constant 0 : i32
    return %c0_i32, %c0_i32_0, %c0_i32_1 : i32, i32, i32
  }
  func.func @transform_1(%arg0: i32) -> (i32, i32, i32) {
    %c0_i32 = arith.constant 0 : i32
    %c0_i32_0 = arith.constant 0 : i32
    %c0_i32_1 = arith.constant 0 : i32
    %c0_i32_2 = arith.constant 0 : i32
    return %c0_i32, %c0_i32_0, %c0_i32_1 : i32, i32, i32
  }
  func.func @transform_2(%arg0: i32) -> (i32, i32, i32) {
    %c0_i32 = arith.constant 0 : i32
    %c0_i32_0 = arith.constant 0 : i32
    %c0_i32_1 = arith.constant 0 : i32
    return %arg0, %c0_i32, %c0_i32_0 : i32, i32, i32
  }
  func.func @transform_3(%arg0: i32) -> (i32, i32, i32) {
    %c0_i32 = arith.constant 0 : i32
    %c0_i32_0 = arith.constant 0 : i32
    %c0_i32_1 = arith.constant 0 : i32
    return %arg0, %c0_i32, %c0_i32_0 : i32, i32, i32
  }
}

</mosaic_0001>

<llo_original>
// kernel: tpu_custom_call.1
$region0: #{tpu_custom_call.1}
  #allocation0 [shape = 'u32[]', space=smem, size = 0x4, offset = 0x4, fixed_abs, tag = 'smem constant byte address 0x4 - core index']
  #allocation1 [shape = 'u32[144,128]{1,0:T(1,128)}', space=vmem, size = 0x12000, scoped, tag = 'internal scratch']
  #allocation2 [shape = 'f32[16,256]{1,0:T(8,128)}', space=vmem, size = 0x4000, scoped, tag = 'scratch operand']
  %s0 = inlined_call_operand.hbm [shape: f32[4,48,16], index: 0, kind: input, shape index: {}]
  %s1 = inlined_call_operand.hbm [shape: f32[4,16,1], index: 1, kind: input, shape index: {}]
  %s2 = inlined_call_operand.hbm [shape: f32[2,16,256], index: 2, kind: input, shape index: {}]
  %s3 = inlined_call_operand.hbm [shape: f32[2,16,256], index: 3, kind: output, shape index: {}]
  %s4 = sld [smem:[#allocation0]]
  $region57: #{tpu_custom_call.1} parent=0
    _
  %s6 = ssub.s32 1, %s4
  %s7 = scalar_select 0, %s6, %s4
  $region1: #{tpu_custom_call.1} parent=0
    #allocation3 [shape = 'u8[98304]{0}', space=vmem, size = 0x18000, scoped, tag = 'input window, operand 0, single buffered']
    #allocation4 [shape = 's32[2]{0}', space=sflag, size = 0x8, scoped, tag = 'scoped memory for tpu_custom_call.1']
    #allocation5 [shape = 's32[2]{0}', space=sflag, size = 0x8, scoped, tag = 'scoped memory for tpu_custom_call.1']
    #allocation6 [shape = 'u8[32768]{0}', space=vmem, size = 0x8000, scoped, tag = 'input window, operand 1, single buffered']
    #allocation7 [shape = 's32[1]{0}', space=sflag, size = 0x4, scoped, tag = 'scoped memory for tpu_custom_call.1']
    #allocation8 [shape = 'u8[32768]{0}', space=vmem, size = 0x8000, scoped, tag = 'input window, operand 2']
    #allocation9 [shape = 'u8[32768]{0}', space=vmem, size = 0x8000, scoped, tag = 'output window, operand 0']
    %8 = vsyncpa [#allocation4], 0
    %9 = vsyncpa [#allocation7], 0
    %10 = vsyncpa [#allocation5], 0
    %s11 = scalar_lea.sflag [#allocation5], 1
    %12 = vsyncpa %s11, 0
    loop: start=0, step=1, limit=4
    $region2: #{tpu_custom_call.1} parent=1 // loop_pre_header
      _
    $region3: #{tpu_custom_call.1} parent=1 // loop_header
      %s14 = sphi 0, %s18
      %p15 = scmp.ge.s32.totalorder %s14, 4
      %s22 = sphi 0, %s22
      %s24 = sphi 0, %s22
      %s25 = sphi 0, %s24
      %s39 = sphi 0, %s25
      %s43 = sphi 0, %s43
      %s45 = sphi 0, %s43
      %s46 = sphi 0, %s45
      %s60 = sphi 0, %s46
      %s66 = sphi 0, %s68
      %s69 = sphi 0, %s66
      %s70 = sphi 0, %s69
      %s86 = sphi 0, %s70
      %s92 = sphi 0, %s94
      %s95 = sphi 0, %s92
      %s96 = sphi 0, %s95
      %s112 = sphi 0, %s96
    $region4: #{tpu_custom_call.1} parent=1 // loop_header_branch
      %17 = sbr.rel (%p15) target = $region8
    $region5: #{tpu_custom_call.1} parent=1 // loop_body
      %s19 = ssub.s32 %s14, 1
      %s20 = ssub.s32 %s14, 2
      %s21 = sadd.s32 %s14, 1
      %s23 = sadd.s32 %s22, 1
      %p26 = scmp.eq.s32.totalorder %s14, 1
      %p27 = scmp.ne.s32.totalorder %s22, %s24
      %p28 = scmp.eq.s32.totalorder %s14, 0
      %p29 = por %p27, %p28
      %p30 = scmp.ne.s32.totalorder %s22, %s24
      %p31 = scmp.eq.s32.totalorder %s19, 1
      %p32 = por %p30, %p31
      %p33 = scmp.ne.s32.totalorder %s24, %s25
      %p34 = scmp.eq.s32.totalorder %s19, 0
      %p35 = por %p33, %p34
      %p36 = scmp.ne.s32.totalorder %s24, %s25
      %p37 = scmp.eq.s32.totalorder %s20, 1
      %p38 = por %p36, %p37
      %p40 = scmp.ne.s32.totalorder %s25, %s39
      %p41 = scmp.eq.s32.totalorder %s20, 0
      %p42 = por %p40, %p41
      %s44 = sadd.s32 %s43, 1
      %p47 = scmp.eq.s32.totalorder %s14, 1
      %p48 = scmp.ne.s32.totalorder %s43, %s45
      %p49 = scmp.eq.s32.totalorder %s14, 0
      %p50 = por %p48, %p49
      %p51 = scmp.ne.s32.totalorder %s43, %s45
      %p52 = scmp.eq.s32.totalorder %s19, 1
      %p53 = por %p51, %p52
      %p54 = scmp.ne.s32.totalorder %s45, %s46
      %p55 = scmp.eq.s32.totalorder %s19, 0
      %p56 = por %p54, %p55
      %p57 = scmp.ne.s32.totalorder %s45, %s46
      %p58 = scmp.eq.s32.totalorder %s20, 1
      %p59 = por %p57, %p58
      %p61 = scmp.ne.s32.totalorder %s46, %s60
      %p62 = scmp.eq.s32.totalorder %s20, 0
      %p63 = por %p61, %p62
      %s64 = ssub.s32 %s14, %s21
      %p65 = scmp.eq.s32.totalorder %s64, 0
      %s67 = sadd.s32 %s66, 1
      %s68 = scalar_select %p65, %s66, %s67
      %p71 = pneg %p65
      %p72 = scmp.eq.s32.totalorder %s14, 1
      %p73 = por %p71, %p72
      %p74 = scmp.ne.s32.totalorder %s66, %s69
      %p75 = scmp.eq.s32.totalorder %s14, 0
      %p76 = por %p74, %p75
      %p77 = scmp.ne.s32.totalorder %s66, %s69
      %p78 = scmp.eq.s32.totalorder %s19, 1
      %p79 = por %p77, %p78
      %p80 = scmp.ne.s32.totalorder %s69, %s70
      %p81 = scmp.eq.s32.totalorder %s19, 0
      %p82 = por %p80, %p81
      %p83 = scmp.ne.s32.totalorder %s69, %s70
      %p84 = scmp.eq.s32.totalorder %s20, 1
      %p85 = por %p83, %p84
      %p87 = scmp.ne.s32.totalorder %s70, %s86
      %p88 = scmp.eq.s32.totalorder %s20, 0
      %p89 = por %p87, %p88
      %s90 = ssub.s32 %s14, %s21
      %p91 = scmp.eq.s32.totalorder %s90, 0
      %s93 = sadd.s32 %s92, 1
      %s94 = scalar_select %p91, %s92, %s93
      %p97 = pneg %p91
      %p98 = scmp.eq.s32.totalorder %s14, 1
      %p99 = por %p97, %p98
      %p100 = scmp.ne.s32.totalorder %s92, %s95
      %p101 = scmp.eq.s32.totalorder %s14, 0
      %p102 = por %p100, %p101
      %p103 = scmp.ne.s32.totalorder %s92, %s95
      %p104 = scmp.eq.s32.totalorder %s19, 1
      %p105 = por %p103, %p104
      %p106 = scmp.ne.s32.totalorder %s95, %s96
      %p107 = scmp.eq.s32.totalorder %s19, 0
      %p108 = por %p106, %p107
      %p109 = scmp.ne.s32.totalorder %s95, %s96
      %p110 = scmp.eq.s32.totalorder %s20, 1
      %p111 = por %p109, %p110
      %p113 = scmp.ne.s32.totalorder %s96, %s112
      %p114 = scmp.eq.s32.totalorder %s20, 0
      %p115 = por %p113, %p114
      %p116 = scmp.le.s32.totalorder 1, %s14
      %p117 = scmp.lt.s32.totalorder %s14, 3
      %p118 = pnand %p116, %p117
      %p119 = pneg %p118
      // Predicated region
      $region9: #{tpu_custom_call.1} parent=5 // pred_check
        _
      $region10: #{tpu_custom_call.1} parent=5 // pred_check_branch
        %121 = sbr.rel (%p118) target = $region12
      $region11: #{tpu_custom_call.1} parent=5 // pred_region
        %s122 = ssub.s32 %s14, 1
        // Predicated region
        $region13: #{tpu_custom_call.1} parent=11 // pred_check
          %p123 = pneg %p35
        $region14: #{tpu_custom_call.1} parent=11 // pred_check_branch
          %125 = sbr.rel (%p123) target = $region16
        $region15: #{tpu_custom_call.1} parent=11 // pred_region
          %s127 = ssub.s32 3072, 3072
          %128 = vsyncadd [#allocation4], %s127
          %s129 = sshll.u32 [#allocation3], 4
          %s130 = int_to_ptr.vmem [resolvable:$true] %s129
          %135 = dma.hbm_to_vmem [thread:$0]  %s0, 3072, %s130, [#allocation4], 128, 128, 8
        $region16: #{tpu_custom_call.1} parent=11 // pred_fallthru
          _
        // Predicated region
        $region17: #{tpu_custom_call.1} parent=11 // pred_check
          %p136 = pneg %p56
        $region18: #{tpu_custom_call.1} parent=11 // pred_check_branch
          %138 = sbr.rel (%p136) target = $region20
        $region19: #{tpu_custom_call.1} parent=11 // pred_region
          %s140 = ssub.s32 1024, 1024
          %141 = vsyncadd [#allocation7], %s140
          %s142 = sshll.u32 [#allocation6], 4
          %s143 = int_to_ptr.vmem [resolvable:$true] %s142
          %148 = dma.hbm_to_vmem [thread:$0]  %s1, 1024, %s143, [#allocation7], 128, 128, 8
        $region20: #{tpu_custom_call.1} parent=11 // pred_fallthru
          _
      $region12: #{tpu_custom_call.1} parent=5 // pred_fallthru
        _
      %p149 = scmp.lt.s32.totalorder %s14, 2
      // Predicated region
      $region21: #{tpu_custom_call.1} parent=5 // pred_check
        %p150 = pneg %p149
      $region22: #{tpu_custom_call.1} parent=5 // pred_check_branch
        %152 = sbr.rel (%p150) target = $region24
      $region23: #{tpu_custom_call.1} parent=5 // pred_region
        // Predicated region
        $region25: #{tpu_custom_call.1} parent=23 // pred_check
          %p153 = pneg %p76
        $region26: #{tpu_custom_call.1} parent=23 // pred_check_branch
          %155 = sbr.rel (%p153) target = $region28
        $region27: #{tpu_custom_call.1} parent=23 // pred_region
          %s156 = sand.u32 %s14, 1
          %s157 = scalar_lea.sflag [#allocation4], %s156
          %s158 = sand.u32 %s66, 1
          %s159 = smul.addr %s158, 32
          %s160 = scalar_lea.vmem [#allocation8], %s159
          %s162 = ssub.s32 512, 512
          %163 = vsyncadd %s157, %s162
          %s164 = smul.addr %s14, 4
          %s165 = smul.addr %s164, 128
          %s166 = scalar_lea.hbm %s2, %s165
          %s167 = sshll.u32 %s160, 4
          %s168 = int_to_ptr.vmem [resolvable:$true] %s167
          %173 = dma.hbm_to_vmem [thread:$0]  %s166, 512, %s168, %s157, 256, 256, 16
        $region28: #{tpu_custom_call.1} parent=23 // pred_fallthru
          _
      $region24: #{tpu_custom_call.1} parent=5 // pred_fallthru
        _
      %p174 = scmp.le.s32.totalorder 1, %s14
      %p175 = scmp.lt.s32.totalorder %s14, 3
      %p176 = pnand %p174, %p175
      %p177 = pneg %p176
      // Predicated region
      $region29: #{tpu_custom_call.1} parent=5 // pred_check
        _
      $region30: #{tpu_custom_call.1} parent=5 // pred_check_branch
        %179 = sbr.rel (%p176) target = $region32
      $region31: #{tpu_custom_call.1} parent=5 // pred_region
        %s180 = ssub.s32 %s14, 1
        // Predicated region
        $region33: #{tpu_custom_call.1} parent=31 // pred_check
          %p181 = pneg %p35
        $region34: #{tpu_custom_call.1} parent=31 // pred_check_branch
          %183 = sbr.rel (%p181) target = $region36
        $region35: #{tpu_custom_call.1} parent=31 // pred_region
          %184 = dma.done [#allocation4], 3072
        $region36: #{tpu_custom_call.1} parent=31 // pred_fallthru
          _
        // Predicated region
        $region37: #{tpu_custom_call.1} parent=31 // pred_check
          %p185 = pneg %p56
        $region38: #{tpu_custom_call.1} parent=31 // pred_check_branch
          %187 = sbr.rel (%p185) target = $region40
        $region39: #{tpu_custom_call.1} parent=31 // pred_region
          %188 = dma.done [#allocation7], 1024
        $region40: #{tpu_custom_call.1} parent=31 // pred_fallthru
          _
        %s189 = sand.u32 %s19, 1
        %s190 = scalar_lea.sflag [#allocation4], %s189
        %s191 = sand.u32 %s69, 1
        %s192 = smul.addr %s191, 32
        %s193 = scalar_lea.vmem [#allocation8], %s192
        // Predicated region
        $region41: #{tpu_custom_call.1} parent=31 // pred_check
          %p194 = pneg %p82
        $region42: #{tpu_custom_call.1} parent=31 // pred_check_branch
          %196 = sbr.rel (%p194) target = $region44
        $region43: #{tpu_custom_call.1} parent=31 // pred_region
          %197 = dma.done %s190, 512
        $region44: #{tpu_custom_call.1} parent=31 // pred_fallthru
          _
        %p198 = pneg %p35
        %p199 = pneg %p32
        %p200 = pneg %p56
        %p201 = pneg %p53
        %s202 = sand.u32 %s19, 1
        %s203 = scalar_lea.sflag [#allocation4], %s202
        %s204 = sand.u32 %s69, 1
        %s205 = smul.addr %s204, 32
        %s206 = scalar_lea.vmem [#allocation8], %s205
        %p207 = pneg %p82
        %p208 = pneg %p79
        %p209 = pneg %p108
        %p210 = pneg %p105
        %s211 = sand.u32 %s95, 1
        %s212 = scalar_lea.sflag [#allocation5], %s211
        %s213 = sand.u32 %s95, 1
        %s214 = smul.addr %s213, 32
        %s215 = scalar_lea.vmem [#allocation9], %s214
        %v216 = vlaneseq
        %v217 = vand.u32 %v216, 127
        %v218 = vadd.s32 %v217, 128
        %v219 = vld [vmem:[%s193] sm:$0xff]
        %v220 = vld [vmem:[%s193 + $0x8] sm:$0xff]
        %v221 = vld [vmem:[%s193 + $0x10] sm:$0xff]
        %v222 = vld [vmem:[%s193 + $0x18] sm:$0xff]
        %223 = vst [vmem:[#allocation2] sm:$0xff] %v219
        %224 = vst [vmem:[#allocation2 + $0x8] sm:$0xff] %v220
        %225 = vst [vmem:[#allocation2 + $0x10] sm:$0xff] %v221
        %226 = vst [vmem:[#allocation2 + $0x18] sm:$0xff] %v222
        %v227 = vld [vmem:[#allocation2] sm:$0xff]
        %v228 = vld [vmem:[#allocation2 + $0x8] sm:$0xff]
        %v229 = vld [vmem:[#allocation2 + $0x10] sm:$0xff]
        %v230 = vld [vmem:[#allocation2 + $0x18] sm:$0xff]
        %vm231 = vcmp.gt.f32.partialorder %v227, 0.0
        %vm232 = vcmp.gt.f32.partialorder %v228, 0.0
        %vm233 = vcmp.gt.f32.partialorder %v229, 0.0
        %vm234 = vcmp.gt.f32.partialorder %v230, 0.0
        %v235 = vmul.f32 %v227, 0.2
        %v236 = vmul.f32 %v228, 0.2
        %v237 = vmul.f32 %v229, 0.2
        %v238 = vmul.f32 %v230, 0.2
        %v239 = vsel %vm231, %v227, %v235
        %v240 = vsel %vm232, %v228, %v236
        %v241 = vsel %vm233, %v229, %v237
        %v242 = vsel %vm234, %v230, %v238
        %v243 = vld [vmem:[#allocation3] sm:$0xff]
        %v244 = vld [vmem:[#allocation3 + $0x8] sm:$0xff]
        %v245 = vld [vmem:[#allocation3 + $0x10] sm:$0xff]
        %v246 = vld [vmem:[#allocation3 + $0x18] sm:$0xff]
        %v247 = vld [vmem:[#allocation3 + $0x20] sm:$0xff]
        %v248 = vld [vmem:[#allocation3 + $0x28] sm:$0xff]
        %vm249 = vcmask 130048
        %v251 = vsel %vm249, %v243, 0
        %v254 = vsel %vm249, %v244, 0
        %v257 = vsel %vm249, %v245, 0
        %v260 = vsel %vm249, %v246, 0
        %v263 = vsel %vm249, %v247, 0
        %v266 = vsel %vm249, %v248, 0
        %268 = vmatprep.subr.mxu0 %v240
        %269 = vmatpush1.msra.mxu0 %v239
        %270 = vmatprep.subr.mxu0 %v242
        %271 = vmatpush1.msra.mxu0 %v241
        %272 = vmatprep.subr.mxu0 0.0
        %273 = vmatpush1.msra.mxu0 0.0
        %274 = vmatprep.subr.mxu0 0.0
        %275 = vmatpush1.msra.mxu0 0.0
        %276 = vmatprep.subr.mxu0 0.0
        %277 = vmatpush1.msra.mxu0 0.0
        %278 = vmatprep.subr.mxu0 0.0
        %279 = vmatpush1.msra.mxu0 0.0
        %280 = vmatprep.subr.mxu0 0.0
        %281 = vmatpush1.msra.mxu0 0.0
        %282 = vmatprep.subr.mxu0 0.0
        %283 = vmatpush1.msra.mxu0 0.0
        %284 = vmatprep.subr.mxu0 0.0
        %285 = vmatpush1.msra.mxu0 0.0
        %286 = vmatprep.subr.mxu0 0.0
        %287 = vmatpush1.msra.mxu0 0.0
        %288 = vmatprep.subr.mxu0 0.0
        %289 = vmatpush1.msra.mxu0 0.0
        %290 = vmatprep.subr.mxu0 0.0
        %291 = vmatpush1.msra.mxu0 0.0
        %292 = vmatprep.subr.mxu0 0.0
        %293 = vmatpush1.msra.mxu0 0.0
        %294 = vmatprep.subr.mxu0 0.0
        %295 = vmatpush1.msra.mxu0 0.0
        %296 = vmatprep.subr.mxu0 0.0
        %297 = vmatpush1.msra.mxu0 0.0
        %298 = vmatprep.subr.mxu0 0.0
        %299 = vmatpush1.msra.mxu0 0.0
        %300 = vmatprep.subr.mxu0 0.0
        %301 = vmatpush1.msra.mxu0 0.0
        %302 = vmatprep.subr.mxu0 0.0
        %303 = vmatpush1.msra.mxu0 0.0
        %304 = vmatprep.subr.mxu0 0.0
        %305 = vmatpush1.msra.mxu0 0.0
        %306 = vmatprep.subr.mxu0 0.0
        %307 = vmatpush1.msra.mxu0 0.0
        %308 = vmatprep.subr.mxu0 0.0
        %309 = vmatpush1.msra.mxu0 0.0
        %310 = vmatprep.subr.mxu0 0.0
        %311 = vmatpush1.msra.mxu0 0.0
        %312 = vmatprep.subr.mxu0 0.0
        %313 = vmatpush1.msra.mxu0 0.0
        %314 = vmatprep.subr.mxu0 0.0
        %315 = vmatpush1.msra.mxu0 0.0
        %316 = vmatprep.subr.mxu0 0.0
        %317 = vmatpush1.msra.mxu0 0.0
        %318 = vmatprep.subr.mxu0 0.0
        %319 = vmatpush1.msra.mxu0 0.0
        %320 = vmatprep.subr.mxu0 0.0
        %321 = vmatpush1.msra.mxu0 0.0
        %322 = vmatprep.subr.mxu0 0.0
        %323 = vmatpush1.msra.mxu0 0.0
        %324 = vmatprep.subr.mxu0 0.0
        %325 = vmatpush1.msra.mxu0 0.0
        %326 = vmatprep.subr.mxu0 0.0
        %327 = vmatpush1.msra.mxu0 0.0
        %328 = vmatprep.subr.mxu0 0.0
        %329 = vmatpush1.msra.mxu0 0.0
        %330 = vmatprep.subr.mxu0 0.0
        %331 = vmatpush1.msra.mxu0 0.0
        %332 = vmatprep.mubr.f32.mxu0 0.0
        %333 = vmatmul.mubr.f32.gmra.mrb[0].mxu0 %v251
        %v334 = vpop.f32.mrb[0].mxu0
        %v335 = vadd.f32 0.0, %v334
        %v336 = vpop.f32.mrb[0].mxu0
        %v337 = vadd.f32 0.0, %v336
        %338 = vmatprep.mubr.f32.mxu0 0.0
        %339 = vmatmul.mubr.f32.gmra.mrb[0].mxu0 %v254
        %v340 = vpop.f32.mrb[0].mxu0
        %v341 = vadd.f32 0.0, %v340
        %v342 = vpop.f32.mrb[0].mxu0
        %v343 = vadd.f32 0.0, %v342
        %344 = vmatprep.mubr.f32.mxu0 0.0
        %345 = vmatmul.mubr.f32.gmra.mrb[0].mxu0 %v257
        %v346 = vpop.f32.mrb[0].mxu0
        %v347 = vadd.f32 0.0, %v346
        %v348 = vpop.f32.mrb[0].mxu0
        %v349 = vadd.f32 0.0, %v348
        %350 = vmatprep.mubr.f32.mxu0 0.0
        %351 = vmatmul.mubr.f32.gmra.mrb[0].mxu0 %v260
        %v352 = vpop.f32.mrb[0].mxu0
        %v353 = vadd.f32 0.0, %v352
        %v354 = vpop.f32.mrb[0].mxu0
        %v355 = vadd.f32 0.0, %v354
        %356 = vmatprep.mubr.f32.mxu0 0.0
        %357 = vmatmul.mubr.f32.gmra.mrb[0].mxu0 %v263
        %v358 = vpop.f32.mrb[0].mxu0
        %v359 = vadd.f32 0.0, %v358
        %v360 = vpop.f32.mrb[0].mxu0
        %v361 = vadd.f32 0.0, %v360
        %362 = vmatprep.mubr.f32.mxu0 0.0
        %363 = vmatmul.mubr.f32.gmra.mrb[0].mxu0 %v266
        %v364 = vpop.f32.mrb[0].mxu0
        %v365 = vadd.f32 0.0, %v364
        %v366 = vpop.f32.mrb[0].mxu0
        %v367 = vadd.f32 0.0, %v366
        %368 = vdwg.mxu0
        %v369 = vld [vmem:[#allocation6] sm:$0xff]
        %v370 = vld [vmem:[#allocation6 + $0x8] sm:$0xff]
        %372 = vset.pattern.permute.xlu0 0
        %373 = vperm.xlu0 %372, %v369
        %v374 = vpop.permute.xlu0 %373
        %377 = vset.pattern.permute.xlu0 0
        %378 = vperm.xlu0 %377, %v370
        %v379 = vpop.permute.xlu0 %378
        %v381 = vadd.f32 %v359, %v374
        %v382 = vadd.f32 %v361, %v374
        %v383 = vadd.f32 %v365, %v379
        %v384 = vadd.f32 %v367, %v379
        %385 = vrot.lane.b32.xlu0 %v335, 2
        %v386 = vpop.permute.xlu0 %385
        %387 = vrot.lane.b32.xlu0 %v341, 2
        %v388 = vpop.permute.xlu0 %387
        %389 = vrot.lane.b32.xlu0 %v337, 2
        %v390 = vpop.permute.xlu0 %389
        %391 = vrot.lane.b32.xlu0 %v343, 2
        %v392 = vpop.permute.xlu0 %391
        %vm393 = vcmp.lt.s32.totalorder %v217, 2
        %v394 = vsel %vm393, %v386, %v390
        %v395 = vsel %vm393, %v388, %v392
        %v396 = vsel %vm393, %v390, %v386
        %v397 = vsel %vm393, %v392, %v388
        %vm398 = vcmp.ge.s32.totalorder %v217, 2
        %vm399 = vcmp.ge.s32.totalorder %v218, 2
        %v400 = vsel %vm398, %v396, 0.0
        %v401 = vsel %vm399, %v394, 0.0
        %v402 = vsel %vm398, %v397, 0.0
        %v403 = vsel %vm399, %v395, 0.0
        %v404 = vadd.f32 %v381, %v400
        %v405 = vadd.f32 %v382, %v401
        %v406 = vadd.f32 %v383, %v402
        %v407 = vadd.f32 %v384, %v403
        %408 = vrot.lane.b32.xlu0 %v347, 1
        %v409 = vpop.permute.xlu0 %408
        %410 = vrot.lane.b32.xlu0 %v353, 1
        %v411 = vpop.permute.xlu0 %410
        %412 = vrot.lane.b32.xlu0 %v349, 1
        %v413 = vpop.permute.xlu0 %412
        %414 = vrot.lane.b32.xlu0 %v355, 1
        %v415 = vpop.permute.xlu0 %414
        %vm416 = vcmp.lt.s32.totalorder %v217, 1
        %v417 = vsel %vm416, %v409, %v413
        %v418 = vsel %vm416, %v411, %v415
        %v419 = vsel %vm416, %v413, %v409
        %v420 = vsel %vm416, %v415, %v411
        %vm421 = vcmp.ge.s32.totalorder %v217, 1
        %vm422 = vcmp.ge.s32.totalorder %v218, 1
        %v423 = vsel %vm421, %v419, 0.0
        %v424 = vsel %vm422, %v417, 0.0
        %v425 = vsel %vm421, %v420, 0.0
        %v426 = vsel %vm422, %v418, 0.0
        %v427 = vadd.f32 %v404, %v423
        %v428 = vadd.f32 %v405, %v424
        %v429 = vadd.f32 %v406, %v425
        %v430 = vadd.f32 %v407, %v426
        %vm431 = vcmp.gt.f32.partialorder %v427, 0.0
        %vm432 = vcmp.gt.f32.partialorder %v428, 0.0
        %vm433 = vcmp.gt.f32.partialorder %v429, 0.0
        %vm434 = vcmp.gt.f32.partialorder %v430, 0.0
        %v435 = vmul.f32 %v427, 0.2
        %v436 = vmul.f32 %v428, 0.2
        %v437 = vmul.f32 %v429, 0.2
        %v438 = vmul.f32 %v430, 0.2
        %v439 = vsel %vm431, %v427, %v435
        %v440 = vsel %vm432, %v428, %v436
        %v441 = vsel %vm433, %v429, %v437
        %v442 = vsel %vm434, %v430, %v438
        %s443 = scalar_lea.vmem [#allocation3], 48
        %v444 = vld [vmem:[%s443] sm:$0xff]
        %v445 = vld [vmem:[%s443 + $0x8] sm:$0xff]
        %v446 = vld [vmem:[%s443 + $0x10] sm:$0xff]
        %v447 = vld [vmem:[%s443 + $0x18] sm:$0xff]
        %v448 = vld [vmem:[%s443 + $0x20] sm:$0xff]
        %v449 = vld [vmem:[%s443 + $0x28] sm:$0xff]
        %v451 = vsel %vm249, %v444, 0
        %v454 = vsel %vm249, %v445, 0
        %v457 = vsel %vm249, %v446, 0
        %v460 = vsel %vm249, %v447, 0
        %v463 = vsel %vm249, %v448, 0
        %v466 = vsel %vm249, %v449, 0
        %468 = vmatprep.subr.mxu0 %v440
        %469 = vmatpush1.msra.mxu0 %v439
        %470 = vmatprep.subr.mxu0 %v442
        %471 = vmatpush1.msra.mxu0 %v441
        %472 = vmatprep.subr.mxu0 0.0
        %473 = vmatpush1.msra.mxu0 0.0
        %474 = vmatprep.subr.mxu0 0.0
        %475 = vmatpush1.msra.mxu0 0.0
        %476 = vmatprep.subr.mxu0 0.0
        %477 = vmatpush1.msra.mxu0 0.0
        %478 = vmatprep.subr.mxu0 0.0
        %479 = vmatpush1.msra.mxu0 0.0
        %480 = vmatprep.subr.mxu0 0.0
        %481 = vmatpush1.msra.mxu0 0.0
        %482 = vmatprep.subr.mxu0 0.0
        %483 = vmatpush1.msra.mxu0 0.0
        %484 = vmatprep.subr.mxu0 0.0
        %485 = vmatpush1.msra.mxu0 0.0
        %486 = vmatprep.subr.mxu0 0.0
        %487 = vmatpush1.msra.mxu0 0.0
        %488 = vmatprep.subr.mxu0 0.0
        %489 = vmatpush1.msra.mxu0 0.0
        %490 = vmatprep.subr.mxu0 0.0
        %491 = vmatpush1.msra.mxu0 0.0
        %492 = vmatprep.subr.mxu0 0.0
        %493 = vmatpush1.msra.mxu0 0.0
        %494 = vmatprep.subr.mxu0 0.0
        %495 = vmatpush1.msra.mxu0 0.0
        %496 = vmatprep.subr.mxu0 0.0
        %497 = vmatpush1.msra.mxu0 0.0
        %498 = vmatprep.subr.mxu0 0.0
        %499 = vmatpush1.msra.mxu0 0.0
        %500 = vmatprep.subr.mxu0 0.0
        %501 = vmatpush1.msra.mxu0 0.0
        %502 = vmatprep.subr.mxu0 0.0
        %503 = vmatpush1.msra.mxu0 0.0
        %504 = vmatprep.subr.mxu0 0.0
        %505 = vmatpush1.msra.mxu0 0.0
        %506 = vmatprep.subr.mxu0 0.0
        %507 = vmatpush1.msra.mxu0 0.0
        %508 = vmatprep.subr.mxu0 0.0
        %509 = vmatpush1.msra.mxu0 0.0
        %510 = vmatprep.subr.mxu0 0.0
        %511 = vmatpush1.msra.mxu0 0.0
        %512 = vmatprep.subr.mxu0 0.0
        %513 = vmatpush1.msra.mxu0 0.0
        %514 = vmatprep.subr.mxu0 0.0
        %515 = vmatpush1.msra.mxu0 0.0
        %516 = vmatprep.subr.mxu0 0.0
        %517 = vmatpush1.msra.mxu0 0.0
        %518 = vmatprep.subr.mxu0 0.0
        %519 = vmatpush1.msra.mxu0 0.0
        %520 = vmatprep.subr.mxu0 0.0
        %521 = vmatpush1.msra.mxu0 0.0
        %522 = vmatprep.subr.mxu0 0.0
        %523 = vmatpush1.msra.mxu0 0.0
        %524 = vmatprep.subr.mxu0 0.0
        %525 = vmatpush1.msra.mxu0 0.0
        %526 = vmatprep.subr.mxu0 0.0
        %527 = vmatpush1.msra.mxu0 0.0
        %528 = vmatprep.subr.mxu0 0.0
        %529 = vmatpush1.msra.mxu0 0.0
        %530 = vmatprep.subr.mxu0 0.0
        %531 = vmatpush1.msra.mxu0 0.0
        %532 = vmatprep.mubr.f32.mxu0 0.0
        %533 = vmatmul.mubr.f32.gmra.mrb[0].mxu0 %v451
        %v534 = vpop.f32.mrb[0].mxu0
        %v535 = vadd.f32 0.0, %v534
        %v536 = vpop.f32.mrb[0].mxu0
        %v537 = vadd.f32 0.0, %v536
        %538 = vmatprep.mubr.f32.mxu0 0.0
        %539 = vmatmul.mubr.f32.gmra.mrb[0].mxu0 %v454
        %v540 = vpop.f32.mrb[0].mxu0
        %v541 = vadd.f32 0.0, %v540
        %v542 = vpop.f32.mrb[0].mxu0
        %v543 = vadd.f32 0.0, %v542
        %544 = vmatprep.mubr.f32.mxu0 0.0
        %545 = vmatmul.mubr.f32.gmra.mrb[0].mxu0 %v457
        %v546 = vpop.f32.mrb[0].mxu0
        %v547 = vadd.f32 0.0, %v546
        %v548 = vpop.f32.mrb[0].mxu0
        %v549 = vadd.f32 0.0, %v548
        %550 = vmatprep.mubr.f32.mxu0 0.0
        %551 = vmatmul.mubr.f32.gmra.mrb[0].mxu0 %v460
        %v552 = vpop.f32.mrb[0].mxu0
        %v553 = vadd.f32 0.0, %v552
        %v554 = vpop.f32.mrb[0].mxu0
        %v555 = vadd.f32 0.0, %v554
        %556 = vmatprep.mubr.f32.mxu0 0.0
        %557 = vmatmul.mubr.f32.gmra.mrb[0].mxu0 %v463
        %v558 = vpop.f32.mrb[0].mxu0
        %v559 = vadd.f32 0.0, %v558
        %v560 = vpop.f32.mrb[0].mxu0
        %v561 = vadd.f32 0.0, %v560
        %562 = vmatprep.mubr.f32.mxu0 0.0
        %563 = vmatmul.mubr.f32.gmra.mrb[0].mxu0 %v466
        %v564 = vpop.f32.mrb[0].mxu0
        %v565 = vadd.f32 0.0, %v564
        %v566 = vpop.f32.mrb[0].mxu0
        %v567 = vadd.f32 0.0, %v566
        %568 = vdwg.mxu0
        %s569 = scalar_lea.vmem [#allocation6], 16
        %v570 = vld [vmem:[%s569] sm:$0xff]
        %v571 = vld [vmem:[%s569 + $0x8] sm:$0xff]
        %573 = vset.pattern.permute.xlu0 0
        %574 = vperm.xlu0 %573, %v570
        %v575 = vpop.permute.xlu0 %574
        %578 = vset.pattern.permute.xlu0 0
        %579 = vperm.xlu0 %578, %v571
        %v580 = vpop.permute.xlu0 %579
        %v582 = vadd.f32 %v559, %v575
        %v583 = vadd.f32 %v561, %v575
        %v584 = vadd.f32 %v565, %v580
        %v585 = vadd.f32 %v567, %v580
        %586 = vrot.lane.b32.xlu0 %v535, 6
        %v587 = vpop.permute.xlu0 %586
        %588 = vrot.lane.b32.xlu0 %v541, 6
        %v589 = vpop.permute.xlu0 %588
        %590 = vrot.lane.b32.xlu0 %v537, 6
        %v591 = vpop.permute.xlu0 %590
        %592 = vrot.lane.b32.xlu0 %v543, 6
        %v593 = vpop.permute.xlu0 %592
        %vm594 = vcmp.lt.s32.totalorder %v217, 6
        %v595 = vsel %vm594, %v587, %v591
        %v596 = vsel %vm594, %v589, %v593
        %v597 = vsel %vm594, %v591, %v587
        %v598 = vsel %vm594, %v593, %v589
        %vm599 = vcmp.ge.s32.totalorder %v217, 6
        %vm600 = vcmp.ge.s32.totalorder %v218, 6
        %v601 = vsel %vm599, %v597, 0.0
        %v602 = vsel %vm600, %v595, 0.0
        %v603 = vsel %vm599, %v598, 0.0
        %v604 = vsel %vm600, %v596, 0.0
        %v605 = vadd.f32 %v582, %v601
        %v606 = vadd.f32 %v583, %v602
        %v607 = vadd.f32 %v584, %v603
        %v608 = vadd.f32 %v585, %v604
        %609 = vrot.lane.b32.xlu0 %v547, 3
        %v610 = vpop.permute.xlu0 %609
        %611 = vrot.lane.b32.xlu0 %v553, 3
        %v612 = vpop.permute.xlu0 %611
        %613 = vrot.lane.b32.xlu0 %v549, 3
        %v614 = vpop.permute.xlu0 %613
        %615 = vrot.lane.b32.xlu0 %v555, 3
        %v616 = vpop.permute.xlu0 %615
        %vm617 = vcmp.lt.s32.totalorder %v217, 3
        %v618 = vsel %vm617, %v610, %v614
        %v619 = vsel %vm617, %v612, %v616
        %v620 = vsel %vm617, %v614, %v610
        %v621 = vsel %vm617, %v616, %v612
        %vm622 = vcmp.ge.s32.totalorder %v217, 3
        %vm623 = vcmp.ge.s32.totalorder %v218, 3
        %v624 = vsel %vm622, %v620, 0.0
        %v625 = vsel %vm623, %v618, 0.0
        %v626 = vsel %vm622, %v621, 0.0
        %v627 = vsel %vm623, %v619, 0.0
        %v628 = vadd.f32 %v605, %v624
        %v629 = vadd.f32 %v606, %v625
        %v630 = vadd.f32 %v607, %v626
        %v631 = vadd.f32 %v608, %v627
        %v632 = vadd.f32 %v227, %v628
        %v633 = vadd.f32 %v228, %v629
        %v634 = vadd.f32 %v229, %v630
        %v635 = vadd.f32 %v230, %v631
        %636 = vst [vmem:[#allocation2] sm:$0xff] %v632
        %637 = vst [vmem:[#allocation2 + $0x8] sm:$0xff] %v633
        %638 = vst [vmem:[#allocation2 + $0x10] sm:$0xff] %v634
        %639 = vst [vmem:[#allocation2 + $0x18] sm:$0xff] %v635
        %v640 = vld [vmem:[#allocation2] sm:$0xff]
        %v641 = vld [vmem:[#allocation2 + $0x8] sm:$0xff]
        %v642 = vld [vmem:[#allocation2 + $0x10] sm:$0xff]
        %v643 = vld [vmem:[#allocation2 + $0x18] sm:$0xff]
        %vm644 = vcmp.gt.f32.partialorder %v640, 0.0
        %vm645 = vcmp.gt.f32.partialorder %v641, 0.0
        %vm646 = vcmp.gt.f32.partialorder %v642, 0.0
        %vm647 = vcmp.gt.f32.partialorder %v643, 0.0
        %v648 = vmul.f32 %v640, 0.2
        %v649 = vmul.f32 %v641, 0.2
        %v650 = vmul.f32 %v642, 0.2
        %v651 = vmul.f32 %v643, 0.2
        %v652 = vsel %vm644, %v640, %v648
        %v653 = vsel %vm645, %v641, %v649
        %v654 = vsel %vm646, %v642, %v650
        %v655 = vsel %vm647, %v643, %v651
        %s656 = scalar_lea.vmem [#allocation3], 96
        %v657 = vld [vmem:[%s656] sm:$0xff]
        %v658 = vld [vmem:[%s656 + $0x8] sm:$0xff]
        %v659 = vld [vmem:[%s656 + $0x10] sm:$0xff]
        %v660 = vld [vmem:[%s656 + $0x18] sm:$0xff]
        %v661 = vld [vmem:[%s656 + $0x20] sm:$0xff]
        %v662 = vld [vmem:[%s656 + $0x28] sm:$0xff]
        %v664 = vsel %vm249, %v657, 0
        %v667 = vsel %vm249, %v658, 0
        %v670 = vsel %vm249, %v659, 0
        %v673 = vsel %vm249, %v660, 0
        %v676 = vsel %vm249, %v661, 0
        %v679 = vsel %vm249, %v662, 0
        %681 = vmatprep.subr.mxu0 %v653
        %682 = vmatpush1.msra.mxu0 %v652
        %683 = vmatprep.subr.mxu0 %v655
        %684 = vmatpush1.msra.mxu0 %v654
        %685 = vmatprep.subr.mxu0 0.0
        %686 = vmatpush1.msra.mxu0 0.0
        %687 = vmatprep.subr.mxu0 0.0
        %688 = vmatpush1.msra.mxu0 0.0
        %689 = vmatprep.subr.mxu0 0.0
        %690 = vmatpush1.msra.mxu0 0.0
        %691 = vmatprep.subr.mxu0 0.0
        %692 = vmatpush1.msra.mxu0 0.0
        %693 = vmatprep.subr.mxu0 0.0
        %694 = vmatpush1.msra.mxu0 0.0
        %695 = vmatprep.subr.mxu0 0.0
        %696 = vmatpush1.msra.mxu0 0.0
        %697 = vmatprep.subr.mxu0 0.0
        %698 = vmatpush1.msra.mxu0 0.0
        %699 = vmatprep.subr.mxu0 0.0
        %700 = vmatpush1.msra.mxu0 0.0
        %701 = vmatprep.subr.mxu0 0.0
        %702 = vmatpush1.msra.mxu0 0.0
        %703 = vmatprep.subr.mxu0 0.0
        %704 = vmatpush1.msra.mxu0 0.0
        %705 = vmatprep.subr.mxu0 0.0
        %706 = vmatpush1.msra.mxu0 0.0
        %707 = vmatprep.subr.mxu0 0.0
        %708 = vmatpush1.msra.mxu0 0.0
        %709 = vmatprep.subr.mxu0 0.0
        %710 = vmatpush1.msra.mxu0 0.0
        %711 = vmatprep.subr.mxu0 0.0
        %712 = vmatpush1.msra.mxu0 0.0
        %713 = vmatprep.subr.mxu0 0.0
        %714 = vmatpush1.msra.mxu0 0.0
        %715 = vmatprep.subr.mxu0 0.0
        %716 = vmatpush1.msra.mxu0 0.0
        %717 = vmatprep.subr.mxu0 0.0
        %718 = vmatpush1.msra.mxu0 0.0
        %719 = vmatprep.subr.mxu0 0.0
        %720 = vmatpush1.msra.mxu0 0.0
        %721 = vmatprep.subr.mxu0 0.0
        %722 = vmatpush1.msra.mxu0 0.0
        %723 = vmatprep.subr.mxu0 0.0
        %724 = vmatpush1.msra.mxu0 0.0
        %725 = vmatprep.subr.mxu0 0.0
        %726 = vmatpush1.msra.mxu0 0.0
        %727 = vmatprep.subr.mxu0 0.0
        %728 = vmatpush1.msra.mxu0 0.0
        %729 = vmatprep.subr.mxu0 0.0
        %730 = vmatpush1.msra.mxu0 0.0
        %731 = vmatprep.subr.mxu0 0.0
        %732 = vmatpush1.msra.mxu0 0.0
        %733 = vmatprep.subr.mxu0 0.0
        %734 = vmatpush1.msra.mxu0 0.0
        %735 = vmatprep.subr.mxu0 0.0
        %736 = vmatpush1.msra.mxu0 0.0
        %737 = vmatprep.subr.mxu0 0.0
        %738 = vmatpush1.msra.mxu0 0.0
        %739 = vmatprep.subr.mxu0 0.0
        %740 = vmatpush1.msra.mxu0 0.0
        %741 = vmatprep.subr.mxu0 0.0
        %742 = vmatpush1.msra.mxu0 0.0
        %743 = vmatprep.subr.mxu0 0.0
        %744 = vmatpush1.msra.mxu0 0.0
        %745 = vmatprep.mubr.f32.mxu0 0.0
        %746 = vmatmul.mubr.f32.gmra.mrb[0].mxu0 %v664
        %v747 = vpop.f32.mrb[0].mxu0
        %v748 = vadd.f32 0.0, %v747
        %v749 = vpop.f32.mrb[0].mxu0
        %v750 = vadd.f32 0.0, %v749
        %751 = vmatprep.mubr.f32.mxu0 0.0
        %752 = vmatmul.mubr.f32.gmra.mrb[0].mxu0 %v667
        %v753 = vpop.f32.mrb[0].mxu0
        %v754 = vadd.f32 0.0, %v753
        %v755 = vpop.f32.mrb[0].mxu0
        %v756 = vadd.f32 0.0, %v755
        %757 = vmatprep.mubr.f32.mxu0 0.0
        %758 = vmatmul.mubr.f32.gmra.mrb[0].mxu0 %v670
        %v759 = vpop.f32.mrb[0].mxu0
        %v760 = vadd.f32 0.0, %v759
        %v761 = vpop.f32.mrb[0].mxu0
        %v762 = vadd.f32 0.0, %v761
        %763 = vmatprep.mubr.f32.mxu0 0.0
        %764 = vmatmul.mubr.f32.gmra.mrb[0].mxu0 %v673
        %v765 = vpop.f32.mrb[0].mxu0
        %v766 = vadd.f32 0.0, %v765
        %v767 = vpop.f32.mrb[0].mxu0
        %v768 = vadd.f32 0.0, %v767
        %769 = vmatprep.mubr.f32.mxu0 0.0
        %770 = vmatmul.mubr.f32.gmra.mrb[0].mxu0 %v676
        %v771 = vpop.f32.mrb[0].mxu0
        %v772 = vadd.f32 0.0, %v771
        %v773 = vpop.f32.mrb[0].mxu0
        %v774 = vadd.f32 0.0, %v773
        %775 = vmatprep.mubr.f32.mxu0 0.0
        %776 = vmatmul.mubr.f32.gmra.mrb[0].mxu0 %v679
        %v777 = vpop.f32.mrb[0].mxu0
        %v778 = vadd.f32 0.0, %v777
        %v779 = vpop.f32.mrb[0].mxu0
        %v780 = vadd.f32 0.0, %v779
        %781 = vdwg.mxu0
        %s782 = scalar_lea.vmem [#allocation6], 32
        %v783 = vld [vmem:[%s782] sm:$0xff]
        %v784 = vld [vmem:[%s782 + $0x8] sm:$0xff]
        %786 = vset.pattern.permute.xlu0 0
        %787 = vperm.xlu0 %786, %v783
        %v788 = vpop.permute.xlu0 %787
        %791 = vset.pattern.permute.xlu0 0
        %792 = vperm.xlu0 %791, %v784
        %v793 = vpop.permute.xlu0 %792
        %v795 = vadd.f32 %v772, %v788
        %v796 = vadd.f32 %v774, %v788
        %v797 = vadd.f32 %v778, %v793
        %v798 = vadd.f32 %v780, %v793
        %799 = vrot.lane.b32.xlu0 %v748, 10
        %v800 = vpop.permute.xlu0 %799
        %801 = vrot.lane.b32.xlu0 %v754, 10
        %v802 = vpop.permute.xlu0 %801
        %803 = vrot.lane.b32.xlu0 %v750, 10
        %v804 = vpop.permute.xlu0 %803
        %805 = vrot.lane.b32.xlu0 %v756, 10
        %v806 = vpop.permute.xlu0 %805
        %vm807 = vcmp.lt.s32.totalorder %v217, 10
        %v808 = vsel %vm807, %v800, %v804
        %v809 = vsel %vm807, %v802, %v806
        %v810 = vsel %vm807, %v804, %v800
        %v811 = vsel %vm807, %v806, %v802
        %vm812 = vcmp.ge.s32.totalorder %v217, 10
        %vm813 = vcmp.ge.s32.totalorder %v218, 10
        %v814 = vsel %vm812, %v810, 0.0
        %v815 = vsel %vm813, %v808, 0.0
        %v816 = vsel %vm812, %v811, 0.0
        %v817 = vsel %vm813, %v809, 0.0
        %v818 = vadd.f32 %v795, %v814
        %v819 = vadd.f32 %v796, %v815
        %v820 = vadd.f32 %v797, %v816
        %v821 = vadd.f32 %v798, %v817
        %822 = vrot.lane.b32.xlu0 %v760, 5
        %v823 = vpop.permute.xlu0 %822
        %824 = vrot.lane.b32.xlu0 %v766, 5
        %v825 = vpop.permute.xlu0 %824
        %826 = vrot.lane.b32.xlu0 %v762, 5
        %v827 = vpop.permute.xlu0 %826
        %828 = vrot.lane.b32.xlu0 %v768, 5
        %v829 = vpop.permute.xlu0 %828
        %vm830 = vcmp.lt.s32.totalorder %v217, 5
        %v831 = vsel %vm830, %v823, %v827
        %v832 = vsel %vm830, %v825, %v829
        %v833 = vsel %vm830, %v827, %v823
        %v834 = vsel %vm830, %v829, %v825
        %vm835 = vcmp.ge.s32.totalorder %v217, 5
        %vm836 = vcmp.ge.s32.totalorder %v218, 5
        %v837 = vsel %vm835, %v833, 0.0
        %v838 = vsel %vm836, %v831, 0.0
        %v839 = vsel %vm835, %v834, 0.0
        %v840 = vsel %vm836, %v832, 0.0
        %v841 = vadd.f32 %v818, %v837
        %v842 = vadd.f32 %v819, %v838
        %v843 = vadd.f32 %v820, %v839
        %v844 = vadd.f32 %v821, %v840
        %vm845 = vcmp.gt.f32.partialorder %v841, 0.0
        %vm846 = vcmp.gt.f32.partialorder %v842, 0.0
        %vm847 = vcmp.gt.f32.partialorder %v843, 0.0
        %vm848 = vcmp.gt.f32.partialorder %v844, 0.0
        %v849 = vmul.f32 %v841, 0.2
        %v850 = vmul.f32 %v842, 0.2
        %v851 = vmul.f32 %v843, 0.2
        %v852 = vmul.f32 %v844, 0.2
        %v853 = vsel %vm845, %v841, %v849
        %v854 = vsel %vm846, %v842, %v850
        %v855 = vsel %vm847, %v843, %v851
        %v856 = vsel %vm848, %v844, %v852
        %s857 = scalar_lea.vmem [#allocation3], 144
        %v858 = vld [vmem:[%s857] sm:$0xff]
        %v859 = vld [vmem:[%s857 + $0x8] sm:$0xff]
        %v860 = vld [vmem:[%s857 + $0x10] sm:$0xff]
        %v861 = vld [vmem:[%s857 + $0x18] sm:$0xff]
        %v862 = vld [vmem:[%s857 + $0x20] sm:$0xff]
        %v863 = vld [vmem:[%s857 + $0x28] sm:$0xff]
        %v865 = vsel %vm249, %v858, 0
        %v868 = vsel %vm249, %v859, 0
        %v871 = vsel %vm249, %v860, 0
        %v874 = vsel %vm249, %v861, 0
        %v877 = vsel %vm249, %v862, 0
        %v880 = vsel %vm249, %v863, 0
        %882 = vmatprep.subr.mxu0 %v854
        %883 = vmatpush1.msra.mxu0 %v853
        %884 = vmatprep.subr.mxu0 %v856
        %885 = vmatpush1.msra.mxu0 %v855
        %886 = vmatprep.subr.mxu0 0.0
        %887 = vmatpush1.msra.mxu0 0.0
        %888 = vmatprep.subr.mxu0 0.0
        %889 = vmatpush1.msra.mxu0 0.0
        %890 = vmatprep.subr.mxu0 0.0
        %891 = vmatpush1.msra.mxu0 0.0
        %892 = vmatprep.subr.mxu0 0.0
        %893 = vmatpush1.msra.mxu0 0.0
        %894 = vmatprep.subr.mxu0 0.0
        %895 = vmatpush1.msra.mxu0 0.0
        %896 = vmatprep.subr.mxu0 0.0
        %897 = vmatpush1.msra.mxu0 0.0
        %898 = vmatprep.subr.mxu0 0.0
        %899 = vmatpush1.msra.mxu0 0.0
        %900 = vmatprep.subr.mxu0 0.0
        %901 = vmatpush1.msra.mxu0 0.0
        %902 = vmatprep.subr.mxu0 0.0
        %903 = vmatpush1.msra.mxu0 0.0
        %904 = vmatprep.subr.mxu0 0.0
        %905 = vmatpush1.msra.mxu0 0.0
        %906 = vmatprep.subr.mxu0 0.0
        %907 = vmatpush1.msra.mxu0 0.0
        %908 = vmatprep.subr.mxu0 0.0
        %909 = vmatpush1.msra.mxu0 0.0
        %910 = vmatprep.subr.mxu0 0.0
        %911 = vmatpush1.msra.mxu0 0.0
        %912 = vmatprep.subr.mxu0 0.0
        %913 = vmatpush1.msra.mxu0 0.0
        %914 = vmatprep.subr.mxu0 0.0
        %915 = vmatpush1.msra.mxu0 0.0
        %916 = vmatprep.subr.mxu0 0.0
        %917 = vmatpush1.msra.mxu0 0.0
        %918 = vmatprep.subr.mxu0 0.0
        %919 = vmatpush1.msra.mxu0 0.0
        %920 = vmatprep.subr.mxu0 0.0
        %921 = vmatpush1.msra.mxu0 0.0
        %922 = vmatprep.subr.mxu0 0.0
        %923 = vmatpush1.msra.mxu0 0.0
        %924 = vmatprep.subr.mxu0 0.0
        %925 = vmatpush1.msra.mxu0 0.0
        %926 = vmatprep.subr.mxu0 0.0
        %927 = vmatpush1.msra.mxu0 0.0
        %928 = vmatprep.subr.mxu0 0.0
        %929 = vmatpush1.msra.mxu0 0.0
        %930 = vmatprep.subr.mxu0 0.0
        %931 = vmatpush1.msra.mxu0 0.0
        %932 = vmatprep.subr.mxu0 0.0
        %933 = vmatpush1.msra.mxu0 0.0
        %934 = vmatprep.subr.mxu0 0.0
        %935 = vmatpush1.msra.mxu0 0.0
        %936 = vmatprep.subr.mxu0 0.0
        %937 = vmatpush1.msra.mxu0 0.0
        %938 = vmatprep.subr.mxu0 0.0
        %939 = vmatpush1.msra.mxu0 0.0
        %940 = vmatprep.subr.mxu0 0.0
        %941 = vmatpush1.msra.mxu0 0.0
        %942 = vmatprep.subr.mxu0 0.0
        %943 = vmatpush1.msra.mxu0 0.0
        %944 = vmatprep.subr.mxu0 0.0
        %945 = vmatpush1.msra.mxu0 0.0
        %946 = vmatprep.mubr.f32.mxu0 0.0
        %947 = vmatmul.mubr.f32.gmra.mrb[0].mxu0 %v865
        %v948 = vpop.f32.mrb[0].mxu0
        %v949 = vadd.f32 0.0, %v948
        %v950 = vpop.f32.mrb[0].mxu0
        %v951 = vadd.f32 0.0, %v950
        %952 = vmatprep.mubr.f32.mxu0 0.0
        %953 = vmatmul.mubr.f32.gmra.mrb[0].mxu0 %v868
        %v954 = vpop.f32.mrb[0].mxu0
        %v955 = vadd.f32 0.0, %v954
        %v956 = vpop.f32.mrb[0].mxu0
        %v957 = vadd.f32 0.0, %v956
        %958 = vmatprep.mubr.f32.mxu0 0.0
        %959 = vmatmul.mubr.f32.gmra.mrb[0].mxu0 %v871
        %v960 = vpop.f32.mrb[0].mxu0
        %v961 = vadd.f32 0.0, %v960
        %v962 = vpop.f32.mrb[0].mxu0
        %v963 = vadd.f32 0.0, %v962
        %964 = vmatprep.mubr.f32.mxu0 0.0
        %965 = vmatmul.mubr.f32.gmra.mrb[0].mxu0 %v874
        %v966 = vpop.f32.mrb[0].mxu0
        %v967 = vadd.f32 0.0, %v966
        %v968 = vpop.f32.mrb[0].mxu0
        %v969 = vadd.f32 0.0, %v968
        %970 = vmatprep.mubr.f32.mxu0 0.0
        %971 = vmatmul.mubr.f32.gmra.mrb[0].mxu0 %v877
        %v972 = vpop.f32.mrb[0].mxu0
        %v973 = vadd.f32 0.0, %v972
        %v974 = vpop.f32.mrb[0].mxu0
        %v975 = vadd.f32 0.0, %v974
        %976 = vmatprep.mubr.f32.mxu0 0.0
        %977 = vmatmul.mubr.f32.gmra.mrb[0].mxu0 %v880
        %v978 = vpop.f32.mrb[0].mxu0
        %v979 = vadd.f32 0.0, %v978
        %v980 = vpop.f32.mrb[0].mxu0
        %v981 = vadd.f32 0.0, %v980
        %982 = vdwg.mxu0
        %s983 = scalar_lea.vmem [#allocation6], 48
        %v984 = vld [vmem:[%s983] sm:$0xff]
        %v985 = vld [vmem:[%s983 + $0x8] sm:$0xff]
        %987 = vset.pattern.permute.xlu0 0
        %988 = vperm.xlu0 %987, %v984
        %v989 = vpop.permute.xlu0 %988
        %992 = vset.pattern.permute.xlu0 0
        %993 = vperm.xlu0 %992, %v985
        %v994 = vpop.permute.xlu0 %993
        %v996 = vadd.f32 %v973, %v989
        %v997 = vadd.f32 %v975, %v989
        %v998 = vadd.f32 %v979, %v994
        %v999 = vadd.f32 %v981, %v994
        %1000 = vrot.lane.b32.xlu0 %v949, 14
        %v1001 = vpop.permute.xlu0 %1000
        %1002 = vrot.lane.b32.xlu0 %v955, 14
        %v1003 = vpop.permute.xlu0 %1002
        %1004 = vrot.lane.b32.xlu0 %v951, 14
        %v1005 = vpop.permute.xlu0 %1004
        %1006 = vrot.lane.b32.xlu0 %v957, 14
        %v1007 = vpop.permute.xlu0 %1006
        %vm1008 = vcmp.lt.s32.totalorder %v217, 14
        %v1009 = vsel %vm1008, %v1001, %v1005
        %v1010 = vsel %vm1008, %v1003, %v1007
        %v1011 = vsel %vm1008, %v1005, %v1001
        %v1012 = vsel %vm1008, %v1007, %v1003
        %vm1013 = vcmp.ge.s32.totalorder %v217, 14
        %vm1014 = vcmp.ge.s32.totalorder %v218, 14
        %v1015 = vsel %vm1013, %v1011, 0.0
        %v1016 = vsel %vm1014, %v1009, 0.0
        %v1017 = vsel %vm1013, %v1012, 0.0
        %v1018 = vsel %vm1014, %v1010, 0.0
        %v1019 = vadd.f32 %v996, %v1015
        %v1020 = vadd.f32 %v997, %v1016
        %v1021 = vadd.f32 %v998, %v1017
        %v1022 = vadd.f32 %v999, %v1018
        %1023 = vrot.lane.b32.xlu0 %v961, 7
        %v1024 = vpop.permute.xlu0 %1023
        %1025 = vrot.lane.b32.xlu0 %v967, 7
        %v1026 = vpop.permute.xlu0 %1025
        %1027 = vrot.lane.b32.xlu0 %v963, 7
        %v1028 = vpop.permute.xlu0 %1027
        %1029 = vrot.lane.b32.xlu0 %v969, 7
        %v1030 = vpop.permute.xlu0 %1029
        %vm1031 = vcmp.lt.s32.totalorder %v217, 7
        %v1032 = vsel %vm1031, %v1024, %v1028
        %v1033 = vsel %vm1031, %v1026, %v1030
        %v1034 = vsel %vm1031, %v1028, %v1024
        %v1035 = vsel %vm1031, %v1030, %v1026
        %vm1036 = vcmp.ge.s32.totalorder %v217, 7
        %vm1037 = vcmp.ge.s32.totalorder %v218, 7
        %v1038 = vsel %vm1036, %v1034, 0.0
        %v1039 = vsel %vm1037, %v1032, 0.0
        %v1040 = vsel %vm1036, %v1035, 0.0
        %v1041 = vsel %vm1037, %v1033, 0.0
        %v1042 = vadd.f32 %v1019, %v1038
        %v1043 = vadd.f32 %v1020, %v1039
        %v1044 = vadd.f32 %v1021, %v1040
        %v1045 = vadd.f32 %v1022, %v1041
        %v1046 = vadd.f32 %v640, %v1042
        %v1047 = vadd.f32 %v641, %v1043
        %v1048 = vadd.f32 %v642, %v1044
        %v1049 = vadd.f32 %v643, %v1045
        %1050 = vst [vmem:[#allocation2] sm:$0xff] %v1046
        %1051 = vst [vmem:[#allocation2 + $0x8] sm:$0xff] %v1047
        %1052 = vst [vmem:[#allocation2 + $0x10] sm:$0xff] %v1048
        %1053 = vst [vmem:[#allocation2 + $0x18] sm:$0xff] %v1049
        %v1054 = vld [vmem:[#allocation2] sm:$0xff]
        %v1055 = vld [vmem:[#allocation2 + $0x8] sm:$0xff]
        %v1056 = vld [vmem:[#allocation2 + $0x10] sm:$0xff]
        %v1057 = vld [vmem:[#allocation2 + $0x18] sm:$0xff]
        %1058 = vst [vmem:[%s215] sm:$0xff] %v1054
        %1059 = vst [vmem:[%s215 + $0x8] sm:$0xff] %v1055
        %1060 = vst [vmem:[%s215 + $0x10] sm:$0xff] %v1056
        %1061 = vst [vmem:[%s215 + $0x18] sm:$0xff] %v1057
        %s1062 = sand.u32 %s95, 1
        %s1063 = scalar_lea.sflag [#allocation5], %s1062
        %s1064 = sand.u32 %s95, 1
        %s1065 = smul.addr %s1064, 32
        %s1066 = scalar_lea.vmem [#allocation9], %s1065
        // Predicated region
        $region45: #{tpu_custom_call.1} parent=31 // pred_check
          %p1067 = pneg %p105
        $region46: #{tpu_custom_call.1} parent=31 // pred_check_branch
          %1069 = sbr.rel (%p1067) target = $region48
        $region47: #{tpu_custom_call.1} parent=31 // pred_region
          %s1071 = ssub.s32 512, 512
          %1072 = vsyncadd %s1063, %s1071
          %s1073 = smul.addr %s19, 4
          %s1074 = smul.addr %s1073, 128
          %s1075 = scalar_lea.hbm %s3, %s1074
          %s1076 = sshll.u32 %s1066, 4
          %s1077 = int_to_ptr.vmem [resolvable:$true] %s1076
          %1082 = dma.vmem_to_hbm [thread:$0]  %s1077, 512, %s1075, %s1063, 256, 256, 16
        $region48: #{tpu_custom_call.1} parent=31 // pred_fallthru
          _
      $region32: #{tpu_custom_call.1} parent=5 // pred_fallthru
        _
      %p1083 = scmp.le.s32.totalorder 2, %s14
      // Predicated region
      $region49: #{tpu_custom_call.1} parent=5 // pred_check
        %p1084 = pneg %p1083
      $region50: #{tpu_custom_call.1} parent=5 // pred_check_branch
        %1086 = sbr.rel (%p1084) target = $region52
      $region51: #{tpu_custom_call.1} parent=5 // pred_region
        %s1087 = ssub.s32 %s14, 2
        // Predicated region
        $region53: #{tpu_custom_call.1} parent=51 // pred_check
          %p1088 = pneg %p111
        $region54: #{tpu_custom_call.1} parent=51 // pred_check_branch
          %1090 = sbr.rel (%p1088) target = $region56
        $region55: #{tpu_custom_call.1} parent=51 // pred_region
          %s1091 = sand.u32 %s96, 1
          %s1092 = scalar_lea.sflag [#allocation5], %s1091
          %s1093 = sand.u32 %s96, 1
          %s1094 = smul.addr %s1093, 32
          %s1095 = scalar_lea.vmem [#allocation9], %s1094
          %1096 = dma.done %s1092, 512
        $region56: #{tpu_custom_call.1} parent=51 // pred_fallthru
          _
      $region52: #{tpu_custom_call.1} parent=5 // pred_fallthru
        _
    $region6: #{tpu_custom_call.1} parent=1 // loop_footer
      %s18 = sadd.s32 1, %s14
    $region7: #{tpu_custom_call.1} parent=1 // loop_footer_branch
      %13 = sbr.rel target = $region3
    $region8: #{tpu_custom_call.1} parent=1 // loop_exit
      _
    %1097 = vsyncpa [#allocation4], 1
    %s1098 = scalar_lea.sflag [#allocation4], 1
    %1099 = vsyncpa %s1098, 1
    %1100 = vsyncpa [#allocation7], 1
    %1101 = vsyncpa [#allocation5], 1
    %s1102 = scalar_lea.sflag [#allocation5], 1
    %1103 = vsyncpa %s1102, 1

</llo_original>
